<compile_context>
chip_gen: v5e
topology: v5e:2x2
jax: 0.10.0
libtpu: 0.0.40
codegen_flags: <defaults>
</compile_context>

<pallas_src>
import functools

import jax
import jax.numpy as jnp
from jax import lax
from jax.experimental import pallas as pl
from jax.experimental.pallas import tpu as pltpu

DEFAULT_ROW_BLOCK = 1024   # upper bound on rows (= bs*n_agents) per grid step


def _round_up(v, m):
    return ((v + m - 1) // m) * m


def _pick_row_tiling(R, requested_rb):
    """Row tile selection.

    - pad rows only to the 8-row f32 sublane minimum,
    - cap the tile so the (parallel) grid has >= 2 blocks whenever R >= 16
      (v7x has two TensorCores; costs nothing on single-TC v5e/v6e),
    - rebalance the tile so padding at the tail is minimal."""
    r_min = _round_up(R, 8)
    rb = max(8, min(_round_up(requested_rb, 8), r_min))
    if r_min >= 16:
        rb = min(rb, _round_up(r_min // 2, 8))
    num_blocks = pl.cdiv(R, rb)
    rb = _round_up(pl.cdiv(R, num_blocks), 8)       # rebalance (never grows rb)
    return rb, num_blocks, num_blocks * rb


def _critic_kernel(use_layer_norm, xh_ref, wbig_ref, wih_ref, vec_ref,
                   q_ref, hh_ref):
    H = hh_ref.shape[-1]
    mm_dtype = wbig_ref.dtype            # matmul-input dtype (f32 or bf16)

    xh = xh_ref[...]                     # (RB, K) f32 slab, layout [h | x | 1]
    vecs = vec_ref[...]                  # (8, 3H) f32 packed vector params
    bih = vecs[1:2, :]                   # GRU input-side bias (1, 3H)
    h = xh[:, :H]                        # exact f32 recurrent state

    # Matmul 1 — block-diagonal fc1 + hidden-side GRU gates, biases folded via
    # the trailing ones column:
    #   cols [0:H)  = x @ w1^T  + b1     (pre-ReLU fc1)
    #   cols [H:4H) = h @ whh^T + bhh    (packed r|z|n hidden gates)
    yg = jnp.dot(xh.astype(mm_dtype), wbig_ref[...],
                 preferred_element_type=jnp.float32)
    y = jnp.maximum(yg[:, :H], 0.0)      # relu(fc1(x))
    gh = yg[:, H:]                       # (RB, 3H)

    # Matmul 2 — input-side GRU gates from the fc1 activation.
    gi = jnp.dot(y.astype(mm_dtype), wih_ref[...],
                 preferred_element_type=jnp.float32) + bih

    # GRUCell (PyTorch semantics):
    #   r = sigmoid(i_r + h_r); z = sigmoid(i_z + h_z)
    #   n = tanh(i_n + r * h_n);  h' = (1 - z) * n + z * h
    r = jax.nn.sigmoid(gi[:, :H] + gh[:, :H])
    z = jax.nn.sigmoid(gi[:, H:2 * H] + gh[:, H:2 * H])
    n = jnp.tanh(gi[:, 2 * H:] + r * gh[:, 2 * H:])
    hh = (1.0 - z) * n + z * h

    feat = hh
    if use_layer_norm:   # compile-time flag (getattr(args, 'use_layer_norm', False))
        ln_g = vecs[2:3, :H]
        ln_b = vecs[3:4, :H]
        mean = jnp.mean(hh, axis=-1, keepdims=True)
        var = jnp.mean(jnp.square(hh - mean), axis=-1, keepdims=True)
        feat = (hh - mean) * lax.rsqrt(var + 1e-5) * ln_g + ln_b

    # fc2 (output dim 1): contract over H with the block rows landing on the
    # lane axis -> lane-dense (1, RB) result (unmasked stores, contiguous DMA).
    # vecs[:, :H] is used as an 8-row LHS (row 0 = fc2 weight; other rows unused).
    qall = lax.dot_general(vecs[:, :H], feat, (((1,), (1,)), ((), ())),
                           preferred_element_type=jnp.float32)      # (8, RB)
    q = qall[0:1, :] + vecs[4:5, 0:1]                                # (1, RB)

    q_ref[...] = q.reshape(q_ref.shape).astype(q_ref.dtype)
    hh_ref[...] = hh.astype(hh_ref.dtype)


def prepare_params(params, *, matmul_dtype=jnp.float32):
    """One-time repack of PyTorch-layout parameters into kernel layout.

    Call once at parameter load; avoids per-step transposes / packing.
    bf16 matmul_dtype is valid on all TPU generations (v5e/v6e/v7x MXUs all
    take bf16); elementwise math in the kernel stays f32 either way."""
    H = params["fc1_b"].shape[0]
    input_dim = params["fc1_w"].shape[1]
    K = H + input_dim + 1                     # [h | x | 1]

    # Block-diagonal fused weight (K, 4H): cols [fc1 | r | z | n].
    w_big = jnp.zeros((K, 4 * H), jnp.float32)
    w_big = w_big.at[:H, H:].set(jnp.asarray(params["gru_w_hh"]).T)        # h -> gh
    w_big = w_big.at[H:H + input_dim, :H].set(jnp.asarray(params["fc1_w"]).T)  # x -> y
    w_big = w_big.at[K - 1, :H].set(params["fc1_b"])                      # ones -> b1
    w_big = w_big.at[K - 1, H:].set(params["gru_b_hh"])                   # ones -> bhh
    w_big = w_big.astype(matmul_dtype)

    w_ih = jnp.asarray(params["gru_w_ih"]).T.astype(matmul_dtype)         # (H, 3H), cols [r|z|n]

    vecs = jnp.zeros((8, 3 * H), jnp.float32)                             # packed vector params
    vecs = vecs.at[0, :H].set(params["fc2_w"][0])
    vecs = vecs.at[1, :].set(params["gru_b_ih"])
    vecs = vecs.at[2, :H].set(params["ln_g"])
    vecs = vecs.at[3, :H].set(params["ln_b"])
    vecs = vecs.at[4, 0].set(params["fc2_b"][0])
    return {"w_big": w_big, "w_ih": w_ih, "vecs": vecs}


@functools.partial(jax.jit, static_argnames=("use_layer_norm", "row_block"))
def mappo_rnn_critic_forward(inputs, hidden, kparams, *, use_layer_norm=False,
                             row_block=DEFAULT_ROW_BLOCK):
    """inputs: (bs, n_agents, input_dim), hidden: (bs, n_agents, H) ->
       (q: (bs, n_agents, 1), new_hidden: (bs, n_agents, H))."""
    bs, n_agents, input_dim = inputs.shape
    H = hidden.shape[-1]
    R = bs * n_agents
    K = H + input_dim + 1

    rb, num_blocks, R_pad = _pick_row_tiling(R, row_block)

    # One f32 input slab [h | x | 1]; the kernel casts it to the matmul dtype
    # for the MXU but keeps the exact f32 h for the gate update (1-z)*n + z*h.
    x = inputs.reshape(R, input_dim).astype(jnp.float32)
    h = hidden.reshape(R, H).astype(jnp.float32)
    ones = jnp.ones((R, 1), jnp.float32)
    xh = jnp.concatenate([h, x, ones], axis=1)            # (R, K)
    if R_pad != R:
        xh = jnp.pad(xh, ((0, R_pad - R), (0, 0)))        # padded rows -> garbage, sliced off below

    row_in_spec = pl.BlockSpec((rb, K), lambda i: (i, 0))
    # Constant-index weight/param operands: fetched once by the pipeline.
    const_spec = lambda arr: pl.BlockSpec(arr.shape, lambda i: (0,) * arr.ndim)

    q, hh = pl.pallas_call(
        functools.partial(_critic_kernel, use_layer_norm),
        grid=(num_blocks,),
        in_specs=[row_in_spec,
                  const_spec(kparams["w_big"]),
                  const_spec(kparams["w_ih"]),
                  const_spec(kparams["vecs"])],
        out_specs=[pl.BlockSpec((1, 1, rb), lambda i: (i, 0, 0)),   # lane-dense q rows
                   pl.BlockSpec((rb, H), lambda i: (i, 0))],
        out_shape=(jax.ShapeDtypeStruct((num_blocks, 1, rb), jnp.float32),
                   jax.ShapeDtypeStruct((R_pad, H), jnp.float32)),
        compiler_params=pltpu.CompilerParams(
            dimension_semantics=("parallel",),        # row blocks shard across v7x's 2 TCs
            vmem_limit_bytes=32 * 1024 * 1024),       # << v7x's 64 MiB/TC ceiling, safe everywhere
    )(xh, kparams["w_big"], kparams["w_ih"], kparams["vecs"])

    q = q.reshape(R_pad)[:R].reshape(bs, n_agents, 1)
    hh = hh[:R].reshape(bs, n_agents, H)
    return q, hh


def _reference_forward(inputs, hidden, params, use_layer_norm,
                       matmul_dtype=jnp.float32):
    """Pure-JAX mirror of the PyTorch forward (optionally bf16 matmul inputs)."""
    bs, n_agents, _ = inputs.shape
    H = hidden.shape[-1]
    x = inputs.reshape(-1, inputs.shape[-1])
    h = hidden.reshape(-1, H)
    mm = lambda a, b: jnp.dot(a.astype(matmul_dtype), b.astype(matmul_dtype),
                              preferred_element_type=jnp.float32)
    y = jax.nn.relu(mm(x, params["fc1_w"].T) + params["fc1_b"])
    gi = mm(y, params["gru_w_ih"].T) + params["gru_b_ih"]
    gh = mm(h, params["gru_w_hh"].T) + params["gru_b_hh"]
    i_r, i_z, i_n = gi[:, :H], gi[:, H:2 * H], gi[:, 2 * H:]
    h_r, h_z, h_n = gh[:, :H], gh[:, H:2 * H], gh[:, 2 * H:]
    r = jax.nn.sigmoid(i_r + h_r)
    z = jax.nn.sigmoid(i_z + h_z)
    n = jnp.tanh(i_n + r * h_n)
    hh = (1.0 - z) * n + z * h
    feat = hh
    if use_layer_norm:
        mean = hh.mean(-1, keepdims=True)
        var = ((hh - mean) ** 2).mean(-1, keepdims=True)
        feat = (hh - mean) / jnp.sqrt(var + 1e-5) * params["ln_g"] + params["ln_b"]
    q = feat @ params["fc2_w"].T + params["fc2_b"]
    return q.reshape(bs, n_agents, 1), hh.reshape(bs, n_agents, H)


def _init_params(key, input_dim, hidden_dim):
    """Deterministic synthetic init (same shapes as the PyTorch module)."""
    ks = jax.random.split(key, 8)
    u = lambda k, shape, s: jax.random.uniform(k, shape, jnp.float32, -s, s)
    H = hidden_dim
    return {
        "fc1_w": u(ks[0], (H, input_dim), 1.0 / jnp.sqrt(input_dim)),
        "fc1_b": u(ks[1], (H,), 1.0 / jnp.sqrt(input_dim)),
        "gru_w_ih": u(ks[2], (3 * H, H), 1.0 / jnp.sqrt(H)),
        "gru_w_hh": u(ks[3], (3 * H, H), 1.0 / jnp.sqrt(H)),
        "gru_b_ih": u(ks[4], (3 * H,), 1.0 / jnp.sqrt(H)),
        "gru_b_hh": u(ks[5], (3 * H,), 1.0 / jnp.sqrt(H)),
        "ln_g": jnp.ones((H,), jnp.float32),
        "ln_b": jnp.zeros((H,), jnp.float32),
        "fc2_w": u(ks[6], (1, H), 1.0 / jnp.sqrt(H)),
        "fc2_b": u(ks[7], (1,), 1.0 / jnp.sqrt(H)),
    }


if __name__ == "__main__":
    input_dim, hidden_dim = 48, 32
    key = jax.random.PRNGKey(0)
    k_in, k_h, k_p = jax.random.split(key, 3)

    params = _init_params(k_p, input_dim, hidden_dim)
    kp_f32 = prepare_params(params, matmul_dtype=jnp.float32)
    kp_bf16 = prepare_params(params, matmul_dtype=jnp.bfloat16)

    ok = True

    # f32 path over three row-count regimes:
    #   (4,4): 16 rows -> two 8-row blocks, no padding
    #   (3,3):  9 rows -> two 8-row blocks, 7 padded rows
    #   (2,4):  8 rows -> single block, no padding
    for bs, n_agents in ((4, 4), (3, 3), (2, 4)):
        inputs = jax.random.normal(k_in, (bs, n_agents, input_dim), jnp.float32)
        hidden = jax.random.normal(k_h, (bs, n_agents, hidden_dim), jnp.float32)
        for use_ln in (False, True):
            q_ref, hh_ref = _reference_forward(inputs, hidden, params, use_ln)
            q, hh = mappo_rnn_critic_forward(inputs, hidden, kp_f32,
                                             use_layer_norm=use_ln)
            jax.block_until_ready((q, hh))
            ok &= bool(jnp.allclose(q, q_ref, atol=1e-5, rtol=1e-5))
            ok &= bool(jnp.allclose(hh, hh_ref, atol=1e-5, rtol=1e-5))

    # bf16 matmul-input path (valid on v5e too: only the MXU sees bf16; all
    # elementwise gate/LN math and the recurrent-state blend stay f32),
    # checked against a bf16-mirrored pure-JAX reference (kernel additionally
    # folds the fc1/GRU-hh biases into the bf16 weight, hence the looser tol).
    bs, n_agents = 4, 4
    inputs = jax.random.normal(k_in, (bs, n_agents, input_dim), jnp.float32)
    hidden = jax.random.normal(k_h, (bs, n_agents, hidden_dim), jnp.float32)
    for use_ln in (False, True):
        qb_ref, hhb_ref = _reference_forward(inputs, hidden, params, use_ln,
                                             matmul_dtype=jnp.bfloat16)
        qb, hhb = mappo_rnn_critic_forward(inputs, hidden, kp_bf16,
                                           use_layer_norm=use_ln)
        jax.block_until_ready((qb, hhb))
        ok &= bool(jnp.allclose(qb, qb_ref, atol=2e-2, rtol=2e-2))
        ok &= bool(jnp.allclose(hhb, hhb_ref, atol=2e-2, rtol=2e-2))

    if ok:
        print("KERNEL_OK")
    else:
        print("MISMATCH")
</pallas_src>

<mosaic_0001>
module attributes {stable_mosaic.version = 11 : i64} {
  func.func @_critic_kernel(%arg0: i32, %arg1: memref<8x81xf32, #tpu.memory_space<vmem>>, %arg2: memref<81x128xf32, #tpu.memory_space<vmem>>, %arg3: memref<32x96xf32, #tpu.memory_space<vmem>>, %arg4: memref<8x96xf32, #tpu.memory_space<vmem>>, %arg5: memref<1x1x8xf32, #tpu.memory_space<vmem>>, %arg6: memref<8x32xf32, #tpu.memory_space<vmem>>) attributes {dimension_semantics = [#tpu.dimension_semantics<parallel>], iteration_bounds = array<i64: 2>, scalar_prefetch = 0 : i64, scratch_operands = 0 : i64, tpu.core_type = #tpu.core_type<tc>, window_params = [{transform_indices = @transform_0, window_bounds = array<i64: 8, 81>}, {pipeline_mode = #tpu.pipeline_mode<synchronous>, transform_indices = @transform_1, window_bounds = array<i64: 81, 128>}, {pipeline_mode = #tpu.pipeline_mode<synchronous>, transform_indices = @transform_2, window_bounds = array<i64: 32, 96>}, {pipeline_mode = #tpu.pipeline_mode<synchronous>, transform_indices = @transform_3, window_bounds = array<i64: 8, 96>}, {transform_indices = @transform_4, window_bounds = array<i64: 1, 1, 8>}, {transform_indices = @transform_5, window_bounds = array<i64: 8, 32>}]} {
    %c0 = arith.constant 0 : index
    %c0_0 = arith.constant 0 : index
    %0 = vector.load %arg1[%c0, %c0_0] : memref<8x81xf32, #tpu.memory_space<vmem>>, vector<8x81xf32>
    %c0_1 = arith.constant 0 : index
    %c0_2 = arith.constant 0 : index
    %1 = vector.load %arg4[%c0_1, %c0_2] : memref<8x96xf32, #tpu.memory_space<vmem>>, vector<8x96xf32>
    %2 = vector.extract_strided_slice %1 {offsets = [1, 0], sizes = [1, 96], strides = [1, 1]} : vector<8x96xf32> to vector<1x96xf32>
    %3 = vector.extract_strided_slice %0 {offsets = [0, 0], sizes = [8, 32], strides = [1, 1]} : vector<8x81xf32> to vector<8x32xf32>
    %c0_3 = arith.constant 0 : index
    %c0_4 = arith.constant 0 : index
    %4 = vector.load %arg2[%c0_3, %c0_4] : memref<81x128xf32, #tpu.memory_space<vmem>>, vector<81x128xf32>
    %cst = arith.constant dense<0.000000e+00> : vector<8x128xf32>
    %5 = tpu.matmul %0, %4, %cst {dimension_numbers = #tpu.dot_dimension_numbers<[1], [0], [0], [1], [0, 0, 1, 1], [], []>} : vector<8x81xf32>, vector<81x128xf32>, vector<8x128xf32> -> vector<8x128xf32>
    %6 = vector.extract_strided_slice %5 {offsets = [0, 0], sizes = [8, 32], strides = [1, 1]} : vector<8x128xf32> to vector<8x32xf32>
    %cst_5 = arith.constant 0.000000e+00 : f32
    %7 = vector.broadcast %cst_5 : f32 to vector<8x32xf32>
    %8 = arith.maximumf %6, %7 : vector<8x32xf32>
    %9 = vector.extract_strided_slice %5 {offsets = [0, 32], sizes = [8, 96], strides = [1, 1]} : vector<8x128xf32> to vector<8x96xf32>
    %c0_6 = arith.constant 0 : index
    %c0_7 = arith.constant 0 : index
    %10 = vector.load %arg3[%c0_6, %c0_7] : memref<32x96xf32, #tpu.memory_space<vmem>>, vector<32x96xf32>
    %cst_8 = arith.constant dense<0.000000e+00> : vector<8x96xf32>
    %11 = tpu.matmul %8, %10, %cst_8 {dimension_numbers = #tpu.dot_dimension_numbers<[1], [0], [0], [1], [0, 0, 1, 1], [], []>} : vector<8x32xf32>, vector<32x96xf32>, vector<8x96xf32> -> vector<8x96xf32>
    %12 = vector.broadcast %2 : vector<1x96xf32> to vector<8x96xf32>
    %13 = arith.addf %11, %12 : vector<8x96xf32>
    %14 = vector.extract_strided_slice %13 {offsets = [0, 0], sizes = [8, 32], strides = [1, 1]} : vector<8x96xf32> to vector<8x32xf32>
    %15 = vector.extract_strided_slice %9 {offsets = [0, 0], sizes = [8, 32], strides = [1, 1]} : vector<8x96xf32> to vector<8x32xf32>
    %16 = arith.addf %14, %15 : vector<8x32xf32>
    %17 = arith.negf %16 : vector<8x32xf32>
    %18 = math.exp %17 : vector<8x32xf32>
    %cst_9 = arith.constant 1.000000e+00 : f32
    %19 = vector.broadcast %cst_9 : f32 to vector<8x32xf32>
    %20 = arith.addf %19, %18 : vector<8x32xf32>
    %21 = arith.divf %19, %20 : vector<8x32xf32>
    %22 = vector.extract_strided_slice %13 {offsets = [0, 32], sizes = [8, 32], strides = [1, 1]} : vector<8x96xf32> to vector<8x32xf32>
    %23 = vector.extract_strided_slice %9 {offsets = [0, 32], sizes = [8, 32], strides = [1, 1]} : vector<8x96xf32> to vector<8x32xf32>
    %24 = arith.addf %22, %23 : vector<8x32xf32>
    %25 = arith.negf %24 : vector<8x32xf32>
    %26 = math.exp %25 : vector<8x32xf32>
    %cst_10 = arith.constant 1.000000e+00 : f32
    %27 = vector.broadcast %cst_10 : f32 to vector<8x32xf32>
    %28 = arith.addf %27, %26 : vector<8x32xf32>
    %29 = arith.divf %27, %28 : vector<8x32xf32>
    %30 = vector.extract_strided_slice %13 {offsets = [0, 64], sizes = [8, 32], strides = [1, 1]} : vector<8x96xf32> to vector<8x32xf32>
    %31 = vector.extract_strided_slice %9 {offsets = [0, 64], sizes = [8, 32], strides = [1, 1]} : vector<8x96xf32> to vector<8x32xf32>
    %32 = arith.mulf %21, %31 : vector<8x32xf32>
    %33 = arith.addf %30, %32 : vector<8x32xf32>
    %34 = math.tanh %33 : vector<8x32xf32>
    %cst_11 = arith.constant 1.000000e+00 : f32
    %35 = vector.broadcast %cst_11 : f32 to vector<8x32xf32>
    %36 = arith.subf %35, %29 : vector<8x32xf32>
    %37 = arith.mulf %36, %34 : vector<8x32xf32>
    %38 = arith.mulf %29, %3 : vector<8x32xf32>
    %39 = arith.addf %37, %38 : vector<8x32xf32>
    %40 = vector.extract_strided_slice %1 {offsets = [0, 0], sizes = [8, 32], strides = [1, 1]} : vector<8x96xf32> to vector<8x32xf32>
    %cst_12 = arith.constant dense<0.000000e+00> : vector<8x8xf32>
    %41 = tpu.matmul %40, %39, %cst_12 {dimension_numbers = #tpu.dot_dimension_numbers<[1], [1], [0], [0], [0, 0, 1, 0], [], []>} : vector<8x32xf32>, vector<8x32xf32>, vector<8x8xf32> -> vector<8x8xf32>
    %42 = vector.extract_strided_slice %41 {offsets = [0, 0], sizes = [1, 8], strides = [1, 1]} : vector<8x8xf32> to vector<1x8xf32>
    %43 = vector.extract_strided_slice %1 {offsets = [4, 0], sizes = [1, 1], strides = [1, 1]} : vector<8x96xf32> to vector<1x1xf32>
    %44 = vector.broadcast %43 : vector<1x1xf32> to vector<1x8xf32>
    %45 = arith.addf %42, %44 : vector<1x8xf32>
    %46 = vector.shape_cast %45 : vector<1x8xf32> to vector<1x1x8xf32>
    %c0_13 = arith.constant 0 : index
    %c0_14 = arith.constant 0 : index
    %c0_15 = arith.constant 0 : index
    %47 = vector.load %arg5[%c0_13, %c0_14, %c0_15] : memref<1x1x8xf32, #tpu.memory_space<vmem>>, vector<1x1x8xf32>
    tpu.vector_store %arg5[%c0_13, %c0_14, %c0_15], %46 {strides = array<i32>} : memref<1x1x8xf32, #tpu.memory_space<vmem>>, vector<1x1x8xf32>,
    %c0_16 = arith.constant 0 : index
    %c0_17 = arith.constant 0 : index
    %48 = vector.load %arg6[%c0_16, %c0_17] : memref<8x32xf32, #tpu.memory_space<vmem>>, vector<8x32xf32>
    tpu.vector_store %arg6[%c0_16, %c0_17], %39 {strides = array<i32>} : memref<8x32xf32, #tpu.memory_space<vmem>>, vector<8x32xf32>,
    return
  }
  func.func @transform_0(%arg0: i32) -> (i32, i32) {
    %c0_i32 = arith.constant 0 : i32
    %c0_i32_0 = arith.constant 0 : i32
    return %arg0, %c0_i32 : i32, i32
  }
  func.func @transform_1(%arg0: i32) -> (i32, i32) {
    %c0_i32 = arith.constant 0 : i32
    %c0_i32_0 = arith.constant 0 : i32
    %c0_i32_1 = arith.constant 0 : i32
    return %c0_i32, %c0_i32_0 : i32, i32
  }
  func.func @transform_2(%arg0: i32) -> (i32, i32) {
    %c0_i32 = arith.constant 0 : i32
    %c0_i32_0 = arith.constant 0 : i32
    %c0_i32_1 = arith.constant 0 : i32
    return %c0_i32, %c0_i32_0 : i32, i32
  }
  func.func @transform_3(%arg0: i32) -> (i32, i32) {
    %c0_i32 = arith.constant 0 : i32
    %c0_i32_0 = arith.constant 0 : i32
    %c0_i32_1 = arith.constant 0 : i32
    return %c0_i32, %c0_i32_0 : i32, i32
  }
  func.func @transform_4(%arg0: i32) -> (i32, i32, i32) {
    %c0_i32 = arith.constant 0 : i32
    %c0_i32_0 = arith.constant 0 : i32
    %c0_i32_1 = arith.constant 0 : i32
    return %arg0, %c0_i32, %c0_i32_0 : i32, i32, i32
  }
  func.func @transform_5(%arg0: i32) -> (i32, i32) {
    %c0_i32 = arith.constant 0 : i32
    %c0_i32_0 = arith.constant 0 : i32
    return %arg0, %c0_i32 : i32, i32
  }
}

</mosaic_0001>

<llo_original>
// kernel: mappo_rnn_critic_forward.1
$region0: #{mappo_rnn_critic_forward.1}
  #allocation0 [shape = 'u32[]', space=smem, size = 0x4, offset = 0x4, fixed_abs, tag = 'smem constant byte address 0x4 - core index']
  #allocation1 [shape = 'u32[72,128]{1,0:T(1,128)}', space=vmem, size = 0x9000, scoped, tag = 'internal scratch']
  %s0 = inlined_call_operand.vmem [shape: f32[16,81], index: 0, kind: input, shape index: {}]
  %s1 = inlined_call_operand.hbm [shape: f32[81,128], index: 1, kind: input, shape index: {}]
  %s2 = inlined_call_operand.vmem [shape: f32[32,96], index: 2, kind: input, shape index: {}]
  %s3 = inlined_call_operand.vmem [shape: f32[8,96], index: 3, kind: input, shape index: {}]
  %s4 = inlined_call_operand.vmem [shape: f32[2,1,8], index: 4, kind: output, shape index: {0}]
  %s5 = inlined_call_operand.hbm [shape: f32[16,32], index: 5, kind: output, shape index: {1}]
  %6 = xla_tuple %s4, %s5
  %s7 = sld [smem:[#allocation0]]
  $region61: #{mappo_rnn_critic_forward.1} parent=0
    _
  %s9 = ssub.s32 1, %s7
  %s10 = scalar_select 0, %s9, %s7
  $region1: #{mappo_rnn_critic_forward.1} parent=0
    #allocation2 [shape = 'u8[45056]{0}', space=vmem, size = 0xb000, scoped, tag = 'input window, operand 1, single buffered']
    #allocation3 [shape = 's32[2]{0}', space=sflag, size = 0x8, scoped, tag = 'scoped memory for mappo_rnn_critic_forward.1']
    #allocation4 [shape = 's32[2]{0}', space=sflag, size = 0x8, scoped, tag = 'scoped memory for mappo_rnn_critic_forward.1']
    #allocation5 [shape = 'u8[8192]{0}', space=vmem, size = 0x2000, scoped, tag = 'output window, operand 1']
    %11 = vsyncpa [#allocation3], 0
    %12 = vsyncpa [#allocation4], 0
    %s13 = scalar_lea.sflag [#allocation4], 1
    %14 = vsyncpa %s13, 0
    loop: start=0, step=1, limit=4
    $region2: #{mappo_rnn_critic_forward.1} parent=1 // loop_pre_header
      _
    $region3: #{mappo_rnn_critic_forward.1} parent=1 // loop_header
      %s16 = sphi 0, %s20
      %p17 = scmp.ge.s32.totalorder %s16, 4
      %s26 = sphi 0, %s28
      %s29 = sphi 0, %s26
      %s30 = sphi 0, %s29
      %s46 = sphi 0, %s30
      %s50 = sphi 0, %s50
      %s52 = sphi 0, %s50
      %s53 = sphi 0, %s52
      %s67 = sphi 0, %s53
      %s71 = sphi 0, %s71
      %s73 = sphi 0, %s71
      %s74 = sphi 0, %s73
      %s88 = sphi 0, %s74
      %s92 = sphi 0, %s92
      %s94 = sphi 0, %s92
      %s95 = sphi 0, %s94
      %s109 = sphi 0, %s95
      %s115 = sphi 0, %s117
      %s118 = sphi 0, %s115
      %s119 = sphi 0, %s118
      %s135 = sphi 0, %s119
      %s141 = sphi 0, %s143
      %s144 = sphi 0, %s141
      %s145 = sphi 0, %s144
      %s161 = sphi 0, %s145
    $region4: #{mappo_rnn_critic_forward.1} parent=1 // loop_header_branch
      %19 = sbr.rel (%p17) target = $region8
    $region5: #{mappo_rnn_critic_forward.1} parent=1 // loop_body
      %s21 = ssub.s32 %s16, 1
      %s22 = ssub.s32 %s16, 2
      %s23 = sadd.s32 %s16, 1
      %s24 = ssub.s32 %s16, %s23
      %p25 = scmp.eq.s32.totalorder %s24, 0
      %s27 = sadd.s32 %s26, 1
      %s28 = scalar_select %p25, %s26, %s27
      %p31 = pneg %p25
      %p32 = scmp.eq.s32.totalorder %s16, 1
      %p33 = por %p31, %p32
      %p34 = scmp.ne.s32.totalorder %s26, %s29
      %p35 = scmp.eq.s32.totalorder %s16, 0
      %p36 = por %p34, %p35
      %p37 = scmp.ne.s32.totalorder %s26, %s29
      %p38 = scmp.eq.s32.totalorder %s21, 1
      %p39 = por %p37, %p38
      %p40 = scmp.ne.s32.totalorder %s29, %s30
      %p41 = scmp.eq.s32.totalorder %s21, 0
      %p42 = por %p40, %p41
      %p43 = scmp.ne.s32.totalorder %s29, %s30
      %p44 = scmp.eq.s32.totalorder %s22, 1
      %p45 = por %p43, %p44
      %p47 = scmp.ne.s32.totalorder %s30, %s46
      %p48 = scmp.eq.s32.totalorder %s22, 0
      %p49 = por %p47, %p48
      %s51 = sadd.s32 %s50, 1
      %p54 = scmp.eq.s32.totalorder %s16, 1
      %p55 = scmp.ne.s32.totalorder %s50, %s52
      %p56 = scmp.eq.s32.totalorder %s16, 0
      %p57 = por %p55, %p56
      %p58 = scmp.ne.s32.totalorder %s50, %s52
      %p59 = scmp.eq.s32.totalorder %s21, 1
      %p60 = por %p58, %p59
      %p61 = scmp.ne.s32.totalorder %s52, %s53
      %p62 = scmp.eq.s32.totalorder %s21, 0
      %p63 = por %p61, %p62
      %p64 = scmp.ne.s32.totalorder %s52, %s53
      %p65 = scmp.eq.s32.totalorder %s22, 1
      %p66 = por %p64, %p65
      %p68 = scmp.ne.s32.totalorder %s53, %s67
      %p69 = scmp.eq.s32.totalorder %s22, 0
      %p70 = por %p68, %p69
      %s72 = sadd.s32 %s71, 1
      %p75 = scmp.eq.s32.totalorder %s16, 1
      %p76 = scmp.ne.s32.totalorder %s71, %s73
      %p77 = scmp.eq.s32.totalorder %s16, 0
      %p78 = por %p76, %p77
      %p79 = scmp.ne.s32.totalorder %s71, %s73
      %p80 = scmp.eq.s32.totalorder %s21, 1
      %p81 = por %p79, %p80
      %p82 = scmp.ne.s32.totalorder %s73, %s74
      %p83 = scmp.eq.s32.totalorder %s21, 0
      %p84 = por %p82, %p83
      %p85 = scmp.ne.s32.totalorder %s73, %s74
      %p86 = scmp.eq.s32.totalorder %s22, 1
      %p87 = por %p85, %p86
      %p89 = scmp.ne.s32.totalorder %s74, %s88
      %p90 = scmp.eq.s32.totalorder %s22, 0
      %p91 = por %p89, %p90
      %s93 = sadd.s32 %s92, 1
      %p96 = scmp.eq.s32.totalorder %s16, 1
      %p97 = scmp.ne.s32.totalorder %s92, %s94
      %p98 = scmp.eq.s32.totalorder %s16, 0
      %p99 = por %p97, %p98
      %p100 = scmp.ne.s32.totalorder %s92, %s94
      %p101 = scmp.eq.s32.totalorder %s21, 1
      %p102 = por %p100, %p101
      %p103 = scmp.ne.s32.totalorder %s94, %s95
      %p104 = scmp.eq.s32.totalorder %s21, 0
      %p105 = por %p103, %p104
      %p106 = scmp.ne.s32.totalorder %s94, %s95
      %p107 = scmp.eq.s32.totalorder %s22, 1
      %p108 = por %p106, %p107
      %p110 = scmp.ne.s32.totalorder %s95, %s109
      %p111 = scmp.eq.s32.totalorder %s22, 0
      %p112 = por %p110, %p111
      %s113 = ssub.s32 %s16, %s23
      %p114 = scmp.eq.s32.totalorder %s113, 0
      %s116 = sadd.s32 %s115, 1
      %s117 = scalar_select %p114, %s115, %s116
      %p120 = pneg %p114
      %p121 = scmp.eq.s32.totalorder %s16, 1
      %p122 = por %p120, %p121
      %p123 = scmp.ne.s32.totalorder %s115, %s118
      %p124 = scmp.eq.s32.totalorder %s16, 0
      %p125 = por %p123, %p124
      %p126 = scmp.ne.s32.totalorder %s115, %s118
      %p127 = scmp.eq.s32.totalorder %s21, 1
      %p128 = por %p126, %p127
      %p129 = scmp.ne.s32.totalorder %s118, %s119
      %p130 = scmp.eq.s32.totalorder %s21, 0
      %p131 = por %p129, %p130
      %p132 = scmp.ne.s32.totalorder %s118, %s119
      %p133 = scmp.eq.s32.totalorder %s22, 1
      %p134 = por %p132, %p133
      %p136 = scmp.ne.s32.totalorder %s119, %s135
      %p137 = scmp.eq.s32.totalorder %s22, 0
      %p138 = por %p136, %p137
      %s139 = ssub.s32 %s16, %s23
      %p140 = scmp.eq.s32.totalorder %s139, 0
      %s142 = sadd.s32 %s141, 1
      %s143 = scalar_select %p140, %s141, %s142
      %p146 = pneg %p140
      %p147 = scmp.eq.s32.totalorder %s16, 1
      %p148 = por %p146, %p147
      %p149 = scmp.ne.s32.totalorder %s141, %s144
      %p150 = scmp.eq.s32.totalorder %s16, 0
      %p151 = por %p149, %p150
      %p152 = scmp.ne.s32.totalorder %s141, %s144
      %p153 = scmp.eq.s32.totalorder %s21, 1
      %p154 = por %p152, %p153
      %p155 = scmp.ne.s32.totalorder %s144, %s145
      %p156 = scmp.eq.s32.totalorder %s21, 0
      %p157 = por %p155, %p156
      %p158 = scmp.ne.s32.totalorder %s144, %s145
      %p159 = scmp.eq.s32.totalorder %s22, 1
      %p160 = por %p158, %p159
      %p162 = scmp.ne.s32.totalorder %s145, %s161
      %p163 = scmp.eq.s32.totalorder %s22, 0
      %p164 = por %p162, %p163
      %p165 = scmp.le.s32.totalorder 1, %s16
      %p166 = scmp.lt.s32.totalorder %s16, 3
      %p167 = pnand %p165, %p166
      %p168 = pneg %p167
      // Predicated region
      $region9: #{mappo_rnn_critic_forward.1} parent=5 // pred_check
        _
      $region10: #{mappo_rnn_critic_forward.1} parent=5 // pred_check_branch
        %170 = sbr.rel (%p167) target = $region12
      $region11: #{mappo_rnn_critic_forward.1} parent=5 // pred_region
        %s171 = ssub.s32 %s16, 1
        // Predicated region
        $region13: #{mappo_rnn_critic_forward.1} parent=11 // pred_check
          %p172 = pneg %p63
        $region14: #{mappo_rnn_critic_forward.1} parent=11 // pred_check_branch
          %174 = sbr.rel (%p172) target = $region16
        $region15: #{mappo_rnn_critic_forward.1} parent=11 // pred_region
          %176 = vsyncadd [#allocation3], 0
          %s177 = sshll.u32 %s1, 4
          %s178 = int_to_ptr.hbm [resolvable:$true] %s177
          %s179 = sshll.u32 [#allocation2], 4
          %s180 = int_to_ptr.vmem [resolvable:$true] %s179
          %185 = dma.hbm_to_vmem [thread:$0]  %s178, 1408, %s180, [#allocation3], 128, 128, 8
        $region16: #{mappo_rnn_critic_forward.1} parent=11 // pred_fallthru
          _
        // Predicated region
        $region17: #{mappo_rnn_critic_forward.1} parent=11 // pred_check
          %p186 = pneg %p84
        $region18: #{mappo_rnn_critic_forward.1} parent=11 // pred_check_branch
          %188 = sbr.rel (%p186) target = $region20
        $region19: #{mappo_rnn_critic_forward.1} parent=11 // pred_region
          _
        $region20: #{mappo_rnn_critic_forward.1} parent=11 // pred_fallthru
          _
        // Predicated region
        $region21: #{mappo_rnn_critic_forward.1} parent=11 // pred_check
          %p189 = pneg %p105
        $region22: #{mappo_rnn_critic_forward.1} parent=11 // pred_check_branch
          %191 = sbr.rel (%p189) target = $region24
        $region23: #{mappo_rnn_critic_forward.1} parent=11 // pred_region
          _
        $region24: #{mappo_rnn_critic_forward.1} parent=11 // pred_fallthru
          _
      $region12: #{mappo_rnn_critic_forward.1} parent=5 // pred_fallthru
        _
      %p192 = scmp.lt.s32.totalorder %s16, 2
      // Predicated region
      $region25: #{mappo_rnn_critic_forward.1} parent=5 // pred_check
        %p193 = pneg %p192
      $region26: #{mappo_rnn_critic_forward.1} parent=5 // pred_check_branch
        %195 = sbr.rel (%p193) target = $region28
      $region27: #{mappo_rnn_critic_forward.1} parent=5 // pred_region
        // Predicated region
        $region29: #{mappo_rnn_critic_forward.1} parent=27 // pred_check
          %p196 = pneg %p36
        $region30: #{mappo_rnn_critic_forward.1} parent=27 // pred_check_branch
          %198 = sbr.rel (%p196) target = $region32
        $region31: #{mappo_rnn_critic_forward.1} parent=27 // pred_region
          %p199 = scmp.lt.s32.totalorder %s16, 1
          %s200 = scalar_select %p199, %s16, 1
          %s201 = smul.addr %s200, 8
          %s202 = scalar_lea.vmem %s0, %s201
        $region32: #{mappo_rnn_critic_forward.1} parent=27 // pred_fallthru
          _
      $region28: #{mappo_rnn_critic_forward.1} parent=5 // pred_fallthru
        _
      %p203 = scmp.le.s32.totalorder 1, %s16
      %p204 = scmp.lt.s32.totalorder %s16, 3
      %p205 = pnand %p203, %p204
      %p206 = pneg %p205
      // Predicated region
      $region33: #{mappo_rnn_critic_forward.1} parent=5 // pred_check
        _
      $region34: #{mappo_rnn_critic_forward.1} parent=5 // pred_check_branch
        %208 = sbr.rel (%p205) target = $region36
      $region35: #{mappo_rnn_critic_forward.1} parent=5 // pred_region
        %s209 = ssub.s32 %s16, 1
        // Predicated region
        $region37: #{mappo_rnn_critic_forward.1} parent=35 // pred_check
          %p210 = pneg %p63
        $region38: #{mappo_rnn_critic_forward.1} parent=35 // pred_check_branch
          %212 = sbr.rel (%p210) target = $region40
        $region39: #{mappo_rnn_critic_forward.1} parent=35 // pred_region
          %214 = dma.done [#allocation3], 1408
        $region40: #{mappo_rnn_critic_forward.1} parent=35 // pred_fallthru
          _
        %p215 = scmp.lt.s32.totalorder %s21, 1
        %s216 = scalar_select %p215, %s21, 1
        %s217 = smul.addr %s216, 8
        %s218 = scalar_lea.vmem %s0, %s217
        %p219 = pneg %p42
        %p220 = pneg %p39
        %p221 = pneg %p63
        %p222 = pneg %p60
        %p223 = pneg %p84
        %p224 = pneg %p81
        %p225 = pneg %p105
        %p226 = pneg %p102
        %p227 = pneg %p131
        %p228 = pneg %p128
        %p229 = scmp.lt.s32.totalorder %s21, 1
        %s230 = scalar_select %p229, %s21, 1
        %s231 = scalar_lea.vmem %s4, %s230
        %p232 = pneg %p157
        %p233 = pneg %p154
        %s234 = sand.u32 %s144, 1
        %s235 = scalar_lea.sflag [#allocation4], %s234
        %s236 = sand.u32 %s144, 1
        %s237 = smul.addr %s236, 8
        %s238 = scalar_lea.vmem [#allocation5], %s237
        %p239 = scmp.lt.s32.totalorder %s21, 1
        %s240 = scalar_select %p239, %s21, 1
        %s241 = smul.addr %s240, 8
        %s242 = scalar_lea.vmem %s0, %s241
        %p243 = scmp.lt.s32.totalorder %s21, 1
        %s244 = scalar_select %p243, %s21, 1
        %s245 = scalar_lea.vmem %s4, %s244
        %v246 = vld [vmem:[%s242] sm:$0xff]
        %v247 = vld [vmem:[%s3] sm:$0xff]
        %v248 = vld [vmem:[#allocation2] sm:$0xff]
        %v249 = vld [vmem:[#allocation2 + $0x8] sm:$0xff]
        %v250 = vld [vmem:[#allocation2 + $0x10] sm:$0xff]
        %v251 = vld [vmem:[#allocation2 + $0x18] sm:$0xff]
        %v252 = vld [vmem:[#allocation2 + $0x20] sm:$0xff]
        %v253 = vld [vmem:[#allocation2 + $0x28] sm:$0xff]
        %v254 = vld [vmem:[#allocation2 + $0x30] sm:$0xff]
        %v255 = vld [vmem:[#allocation2 + $0x38] sm:$0xff]
        %v256 = vld [vmem:[#allocation2 + $0x40] sm:$0xff]
        %v257 = vld [vmem:[#allocation2 + $0x48] sm:$0xff]
        %v258 = vld [vmem:[#allocation2 + $0x50] sm:$0x1]
        %vm259 = vcmask 662528
        %v261 = vsel %vm259, %v246, 0
        %vm263 = vcmask 1040384
        %v265 = vsel %vm263, %v258, 0
        %267 = vmatpush.msra.mxu0 0.0
        %268 = vmatpush.msra.mxu0 0.0
        %269 = vmatpush.msra.mxu0 0.0
        %270 = vmatpush.msra.mxu0 0.0
        %271 = vmatpush.msra.mxu0 0.0
        %272 = vmatpush.msra.mxu0 %v265
        %273 = vmatpush.msra.mxu0 %v257
        %274 = vmatpush.msra.mxu0 %v256
        %275 = vmatpush.msra.mxu0 %v255
        %276 = vmatpush.msra.mxu0 %v254
        %277 = vmatpush.msra.mxu0 %v253
        %278 = vmatpush.msra.mxu0 %v252
        %279 = vmatpush.msra.mxu0 %v251
        %280 = vmatpush.msra.mxu0 %v250
        %281 = vmatpush.msra.mxu0 %v249
        %282 = vmatpush.msra.mxu0 %v248
        %283 = vmatmul.f32.gmra.mxu0 %v261
        %v284 = vpop.f32.mrf.mxu0
        %v285 = vadd.f32 0.0, %v284
        %286 = vdwg.mxu0
        %v287 = vmax.f32 %v285, 0.0
        %v288 = vld [vmem:[%s2] sm:$0xff]
        %v289 = vld [vmem:[%s2 + $0x8] sm:$0xff]
        %v290 = vld [vmem:[%s2 + $0x10] sm:$0xff]
        %v291 = vld [vmem:[%s2 + $0x18] sm:$0xff]
        %v292 = vperm.slane %v247, 1
        %vm293 = vcmask 261120
        %v295 = vsel %vm293, %v287, 0
        %297 = vmatpush.msra.mxu0 0.0
        %298 = vmatpush.msra.mxu0 0.0
        %299 = vmatpush.msra.mxu0 0.0
        %300 = vmatpush.msra.mxu0 0.0
        %301 = vmatpush.msra.mxu0 0.0
        %302 = vmatpush.msra.mxu0 0.0
        %303 = vmatpush.msra.mxu0 0.0
        %304 = vmatpush.msra.mxu0 0.0
        %305 = vmatpush.msra.mxu0 0.0
        %306 = vmatpush.msra.mxu0 0.0
        %307 = vmatpush.msra.mxu0 0.0
        %308 = vmatpush.msra.mxu0 0.0
        %309 = vmatpush.msra.mxu0 %v291
        %310 = vmatpush.msra.mxu0 %v290
        %311 = vmatpush.msra.mxu0 %v289
        %312 = vmatpush.msra.mxu0 %v288
        %313 = vmatmul.f32.gmra.mxu0 %v295
        %v314 = vpop.f32.mrf.mxu0
        %v315 = vadd.f32 %v292, %v314
        %316 = vdwg.mxu0
        %318 = vrot.lane.b32.xlu0 %v285, 96
        %v319 = vpop.permute.xlu0 %318
        %v321 = vadd.f32 %v315, %v319
        %v322 = vxor.u32 %v321, 2147483648
        %v323 = vmul.f32 %v322, 1.442695
        %v324 = vpow.pop %v323
        %v325 = vadd.f32 %v324, 1.0
        %v326 = vrcp.pop %v325
        %v327 = vmul.f32 %v325, %v326
        %v328 = vsub.f32 1.0, %v327
        %v329 = vmul.f32 %v326, %v328
        %v330 = vadd.f32 %v326, %v329
        %vm331 = vweird.f32 %v325
        %vm332 = vweird.f32 %v326
        %vm333 = vmor %vm331, %vm332
        %v334 = vsel %vm333, %v326, %v330
        %v335 = vand.u32 2147483647, %v325
        %vm336 = vcmp.eq.f32.partialorder %v335, 8.507059e+37
        %v337 = vand.u32 %v325, 2147483648
        %v338 = vor.u32 1.1754944e-38, %v337
        %v339 = vsel %vm336, %v338, %v334
        %v340 = vmul.f32 1.0, %v339
        %341 = vrot.lane.b32.xlu0 %v285, 32
        %v342 = vpop.permute.xlu0 %341
        %v344 = vmul.f32 %v340, %v342
        %346 = vrot.lane.b32.xlu0 %v344, 64
        %v347 = vpop.permute.xlu0 %346
        %v349 = vadd.f32 %v315, %v347
        %v350 = vtanh.pop %v349
        %v351 = vsub.f32 1.0, %v340
        %353 = vrot.lane.b32.xlu0 %v350, 96
        %v354 = vpop.permute.xlu0 %353
        %v356 = vmul.f32 %v351, %v354
        %357 = vrot.lane.b32.xlu0 %v246, 32
        %v358 = vpop.permute.xlu0 %357
        %v360 = vmul.f32 %v340, %v358
        %v361 = vadd.f32 %v356, %v360
        %363 = vrot.lane.b32.xlu0 %v361, 96
        %v364 = vpop.permute.xlu0 %363
        %v366 = vsel %vm293, %v247, 0
        %v368 = vsel %vm293, %v364, 0
        %370 = vmatpush.xpose.msra.mxu0 0.0
        %371 = vmatpush.xpose.msra.mxu0 0.0
        %372 = vmatpush.xpose.msra.mxu0 0.0
        %373 = vmatpush.xpose.msra.mxu0 0.0
        %374 = vmatpush.xpose.msra.mxu0 0.0
        %375 = vmatpush.xpose.msra.mxu0 0.0
        %376 = vmatpush.xpose.msra.mxu0 0.0
        %377 = vmatpush.xpose.msra.mxu0 0.0
        %378 = vmatpush.xpose.msra.mxu0 0.0
        %379 = vmatpush.xpose.msra.mxu0 0.0
        %380 = vmatpush.xpose.msra.mxu0 0.0
        %381 = vmatpush.xpose.msra.mxu0 0.0
        %382 = vmatpush.xpose.msra.mxu0 0.0
        %383 = vmatpush.xpose.msra.mxu0 0.0
        %384 = vmatpush.xpose.msra.mxu0 0.0
        %385 = vmatpush.xpose.msra.mxu0 %v368
        %386 = vmatmul.f32.gmra.mxu0 %v366
        %v387 = vpop.f32.mrf.mxu0
        %v388 = vadd.f32 0.0, %v387
        %389 = vdwg.mxu0
        %390 = vset.pattern.permute.xlu0 0
        %391 = vperm.xlu0 %390, %v247
        %v392 = vpop.permute.xlu0 %391
        %v393 = vrot.slane %v392, 4
        %v395 = vadd.f32 %v388, %v393
        %vm396 = vcmask 57344
        %397 = vst.msk [vmem:[%s245] sm:$0x1] %vm396, %v395
        %399 = vst.msk [vmem:[%s238] sm:$0xff] %vm293, %v364
        %p400 = scmp.lt.s32.totalorder %s21, 1
        %s401 = scalar_select %p400, %s21, 1
        %s402 = scalar_lea.vmem %s4, %s401
        %s403 = sand.u32 %s144, 1
        %s404 = scalar_lea.sflag [#allocation4], %s403
        %s405 = sand.u32 %s144, 1
        %s406 = smul.addr %s405, 8
        %s407 = scalar_lea.vmem [#allocation5], %s406
        // Predicated region
        $region41: #{mappo_rnn_critic_forward.1} parent=35 // pred_check
          %p408 = pneg %p128
        $region42: #{mappo_rnn_critic_forward.1} parent=35 // pred_check_branch
          %410 = sbr.rel (%p408) target = $region44
        $region43: #{mappo_rnn_critic_forward.1} parent=35 // pred_region
          _
        $region44: #{mappo_rnn_critic_forward.1} parent=35 // pred_fallthru
          _
        // Predicated region
        $region45: #{mappo_rnn_critic_forward.1} parent=35 // pred_check
          %p411 = pneg %p154
        $region46: #{mappo_rnn_critic_forward.1} parent=35 // pred_check_branch
          %413 = sbr.rel (%p411) target = $region48
        $region47: #{mappo_rnn_critic_forward.1} parent=35 // pred_region
          %415 = vsyncadd %s404, 0
          %s416 = smul.addr %s21, 8
          %s417 = scalar_lea.hbm %s5, %s416
          %s419 = sshll.u32 %s407, 4
          %s420 = int_to_ptr.vmem [resolvable:$true] %s419
          %s421 = sshll.u32 %s417, 4
          %s422 = int_to_ptr.hbm [resolvable:$true] %s421
          %424 = dma.vmem_to_hbm [thread:$0]  %s420, 128, %s422, %s404
        $region48: #{mappo_rnn_critic_forward.1} parent=35 // pred_fallthru
          _
      $region36: #{mappo_rnn_critic_forward.1} parent=5 // pred_fallthru
        _
      %p425 = scmp.le.s32.totalorder 2, %s16
      // Predicated region
      $region49: #{mappo_rnn_critic_forward.1} parent=5 // pred_check
        %p426 = pneg %p425
      $region50: #{mappo_rnn_critic_forward.1} parent=5 // pred_check_branch
        %428 = sbr.rel (%p426) target = $region52
      $region51: #{mappo_rnn_critic_forward.1} parent=5 // pred_region
        %s429 = ssub.s32 %s16, 2
        // Predicated region
        $region53: #{mappo_rnn_critic_forward.1} parent=51 // pred_check
          %p430 = pneg %p134
        $region54: #{mappo_rnn_critic_forward.1} parent=51 // pred_check_branch
          %432 = sbr.rel (%p430) target = $region56
        $region55: #{mappo_rnn_critic_forward.1} parent=51 // pred_region
          %p433 = scmp.lt.s32.totalorder %s22, 1
          %s434 = scalar_select %p433, %s22, 1
          %s435 = scalar_lea.vmem %s4, %s434
        $region56: #{mappo_rnn_critic_forward.1} parent=51 // pred_fallthru
          _
        // Predicated region
        $region57: #{mappo_rnn_critic_forward.1} parent=51 // pred_check
          %p436 = pneg %p160
        $region58: #{mappo_rnn_critic_forward.1} parent=51 // pred_check_branch
          %438 = sbr.rel (%p436) target = $region60
        $region59: #{mappo_rnn_critic_forward.1} parent=51 // pred_region
          %s439 = sand.u32 %s145, 1
          %s440 = scalar_lea.sflag [#allocation4], %s439
          %s441 = sand.u32 %s145, 1
          %s442 = smul.addr %s441, 8
          %s443 = scalar_lea.vmem [#allocation5], %s442
          %445 = dma.done %s440, 128
        $region60: #{mappo_rnn_critic_forward.1} parent=51 // pred_fallthru
          _
      $region52: #{mappo_rnn_critic_forward.1} parent=5 // pred_fallthru
        _
    $region6: #{mappo_rnn_critic_forward.1} parent=1 // loop_footer
      %s20 = sadd.s32 1, %s16
    $region7: #{mappo_rnn_critic_forward.1} parent=1 // loop_footer_branch
      %15 = sbr.rel target = $region3
    $region8: #{mappo_rnn_critic_forward.1} parent=1 // loop_exit
      _
    %446 = vsyncpa [#allocation3], 1
    %s447 = scalar_lea.sflag [#allocation3], 1
    %448 = vsyncpa %s447, 1
    %449 = vsyncpa [#allocation4], 1
    %s450 = scalar_lea.sflag [#allocation4], 1
    %451 = vsyncpa %s450, 1

</llo_original>
